<compile_context>
chip_gen: v6e
topology: v6e:2x2x1
jax: 0.10.0
libtpu: 0.0.40
codegen_flags: <defaults>
</compile_context>

<pallas_src>
import functools

import jax
import jax.numpy as jnp
from jax.experimental import pallas as pl
from jax.experimental.pallas import tpu as pltpu


# ------------------------------ shared helpers -------------------------------
def _round_up(x, m):
    return ((x + m - 1) // m) * m


def _vmem_limit_bytes():
    """Usable VMEM budget for this chip generation (with headroom)."""
    try:
        phys = int(pltpu.get_tpu_info().vmem_capacity_bytes)
        if not (8 * 1024 * 1024 <= phys <= 256 * 1024 * 1024):
            phys = 64 * 1024 * 1024
    except Exception:
        phys = 64 * 1024 * 1024          # v7x per-TC size; safe on every gen
    # ~75% of physical, clamped to a sane range (v5e/v6e: ~96 MiB, v7x: 48 MiB).
    return max(16 * 1024 * 1024, min(phys * 3 // 4, 100 * 1024 * 1024))


def _channel_gate(pooled_f32, w0, w1, w2):
    """k=3, pad=1, bias-free conv over the channel (sublane) axis + sigmoid.

    pooled_f32: (TB, C, 1) float32, channels on the sublane axis.
    y[c] = w0 * p[c-1] + w1 * p[c] + w2 * p[c+1]  (zero padded at the edges).
    """
    C = pooled_f32.shape[1]
    idx = jax.lax.broadcasted_iota(jnp.int32, pooled_f32.shape, 1)
    # pltpu.roll requires a non-negative shift: "shift by -1" == shift by C - 1.
    p_left = jnp.where(idx == 0, 0.0, pltpu.roll(pooled_f32, shift=1, axis=1))
    p_right = jnp.where(idx == C - 1, 0.0,
                        pltpu.roll(pooled_f32, shift=C - 1, axis=1))
    y = w0 * p_left + w1 * pooled_f32 + w2 * p_right
    return jax.nn.sigmoid(y)                                   # (TB, C, 1) f32


# ----------------------------- fused single pass -----------------------------
def _eca_fused_kernel(w_ref, x_ref, o_ref, *, hw):
    # w_ref: SMEM (3,) f32 ; x_ref / o_ref: VMEM (TB, C, HW)
    x = x_ref[...]
    if hw % 128 != 0:
        # Explicitly keep VMEM lane padding out of the max when HW isn't a
        # multiple of 128 (the compute is free; HBM DMA is the bottleneck).
        lane = jax.lax.broadcasted_iota(jnp.int32, x.shape, 2)
        xm = jnp.where(lane < hw, x, jnp.array(-jnp.inf, x.dtype))
    else:
        xm = x
    pooled = jnp.max(xm, axis=-1, keepdims=True).astype(jnp.float32)  # (TB, C, 1)
    gate = _channel_gate(pooled, w_ref[0], w_ref[1], w_ref[2])
    o_ref[...] = x * gate.astype(x.dtype)


# -------------------- two-pass path (large feature maps) ---------------------
def _eca_pool_kernel(x_ref, pmax_ref, *, hw, t_lanes, n_t_per, exact):
    # Partial running max over this (sample, split)-slice's lane tiles.
    # x_ref: (1, C, t_lanes) ; pmax_ref: (1, 1, C, 1) f32
    t = pl.program_id(2)

    @pl.when(t == 0)
    def _():
        pmax_ref[...] = jnp.full_like(pmax_ref, -jnp.inf)

    x = x_ref[...]
    if not exact:
        # Mask remainder lanes and clamped (fully out-of-range) duplicate tiles
        # using the UN-clamped global lane index so they never win the max.
        tg = pl.program_id(1) * n_t_per + t           # global lane-tile index
        lane = jax.lax.broadcasted_iota(jnp.int32, x.shape, 2) + tg * t_lanes
        x = jnp.where(lane < hw, x, jnp.array(-jnp.inf, x.dtype))
    blk_max = jnp.max(x, axis=-1, keepdims=True).astype(jnp.float32)  # (1, C, 1)
    pmax_ref[...] = jnp.maximum(pmax_ref[...], blk_max[None])


def _eca_scale_kernel(w_ref, x_ref, pmax_ref, o_ref):
    # Combine the per-split partial maxima, apply the (tiny) conv+sigmoid gate,
    # and do the lane-dense gating multiply.  Gate recompute per tile is free.
    pooled = jnp.max(pmax_ref[...], axis=1)                    # (1, C, 1) f32
    gate = _channel_gate(pooled, w_ref[0], w_ref[1], w_ref[2])
    x = x_ref[...]                                             # (1, C, t_lanes)
    o_ref[...] = x * gate.astype(x.dtype)                      # lane broadcast


# --------------------------------- wrapper -----------------------------------
def eca_layer(x, conv_weight, *, block_budget_bytes=None, two_pass_tile_bytes=None,
              vmem_limit_bytes=None, donate_x=False):
    """ECA forward. x: (B, C, H, W); conv_weight: Conv1d k=3 weight ((1,1,3) or (3,))."""
    B, C, H, W = x.shape
    HW = H * W
    itemsize = jnp.dtype(x.dtype).itemsize
    w = jnp.asarray(conv_weight, dtype=jnp.float32).reshape(-1)
    if w.shape[0] != 3:
        # TODO(synk): only the module's fixed k_size=3 channel conv is implemented.
        raise NotImplementedError("eca_layer supports k_size=3 only")

    if vmem_limit_bytes is None:
        vmem_limit_bytes = _vmem_limit_bytes()
    if block_budget_bytes is None:
        # Fused path holds ~4x the block in VMEM (input + output, each
        # double-buffered); keep ~2/9 of the limit per block for headroom.
        block_budget_bytes = (vmem_limit_bytes * 2) // 9

    x2 = x.reshape(B, C, HW)            # free contiguous reshape; H*W -> lane axis
    sample_bytes = C * HW * itemsize

    if sample_bytes <= block_budget_bytes:
        # ---- single fused pass: pack TB samples per grid step ----
        tb = max(1, block_budget_bytes // sample_bytes)
        if B >= 2:
            tb = min(tb, pl.cdiv(B, 2))  # >=2 parallel steps so both v7x TCs work
        tb = min(tb, B)
        grid_b = pl.cdiv(B, tb)          # partial leading batch block is legal
        out2 = pl.pallas_call(
            functools.partial(_eca_fused_kernel, hw=HW),
            out_shape=jax.ShapeDtypeStruct((B, C, HW), x.dtype),
            grid_spec=pltpu.PrefetchScalarGridSpec(
                num_scalar_prefetch=0,
                grid=(grid_b,),
                in_specs=[
                    pl.BlockSpec(memory_space=pltpu.SMEM),             # conv weights
                    pl.BlockSpec((tb, C, HW), lambda b: (b, 0, 0)),    # x samples
                ],
                out_specs=pl.BlockSpec((tb, C, HW), lambda b: (b, 0, 0)),
            ),
            compiler_params=pltpu.CompilerParams(
                dimension_semantics=("parallel",),
                vmem_limit_bytes=vmem_limit_bytes),
            input_output_aliases=({1: 0} if donate_x else {}),
        )(w, x2)
        return out2.reshape(B, C, H, W)

    # ---- two-pass, spatially tiled (sample too large for a VMEM block) ----
    # Lane-dense 128-multiple tiles over H*W, sized from the real VMEM limit
    # (target a few MiB per block to reach the >=85%-of-roofline DMA regime).
    if two_pass_tile_bytes is None:
        two_pass_tile_bytes = min(4 * 1024 * 1024, vmem_limit_bytes // 8)
    t_lanes = max(128, (two_pass_tile_bytes // (C * itemsize)) // 128 * 128)
    t_lanes = min(t_lanes, _round_up(HW, 128))
    n_t = pl.cdiv(HW, t_lanes)
    # Split the spatial reduction 2-ways on a parallel axis so both v7x
    # TensorCores get work even when B == 1.
    n_split = 2 if n_t >= 2 else 1
    n_t_per = pl.cdiv(n_t, n_split)
    exact_cover = (n_split * n_t_per * t_lanes == HW)

    # Clamp fully out-of-range tile slots back to a valid block; the kernel
    # masks them by (un-clamped) global lane index so they contribute nothing.
    def pool_x_index(b, s, t):
        return (b, 0, jnp.minimum(s * n_t_per + t, n_t - 1))

    pmax = pl.pallas_call(
        functools.partial(_eca_pool_kernel, hw=HW, t_lanes=t_lanes,
                          n_t_per=n_t_per, exact=exact_cover),
        out_shape=jax.ShapeDtypeStruct((B, n_split, C, 1), jnp.float32),
        grid_spec=pltpu.PrefetchScalarGridSpec(
            num_scalar_prefetch=0,
            grid=(B, n_split, n_t_per),
            in_specs=[pl.BlockSpec((1, C, t_lanes), pool_x_index)],
            out_specs=pl.BlockSpec((1, 1, C, 1), lambda b, s, t: (b, s, 0, 0)),
        ),
        compiler_params=pltpu.CompilerParams(
            dimension_semantics=("parallel", "parallel", "arbitrary"),
            vmem_limit_bytes=vmem_limit_bytes),
    )(x2)

    out2 = pl.pallas_call(
        _eca_scale_kernel,
        out_shape=jax.ShapeDtypeStruct((B, C, HW), x.dtype),
        grid_spec=pltpu.PrefetchScalarGridSpec(
            num_scalar_prefetch=0,
            grid=(B, n_t),
            in_specs=[
                pl.BlockSpec(memory_space=pltpu.SMEM),                  # conv weights
                pl.BlockSpec((1, C, t_lanes), lambda b, t: (b, 0, t)),  # x tiles
                pl.BlockSpec((1, n_split, C, 1), lambda b, t: (b, 0, 0, 0)),
            ],
            out_specs=pl.BlockSpec((1, C, t_lanes), lambda b, t: (b, 0, t)),
        ),
        compiler_params=pltpu.CompilerParams(
            dimension_semantics=("parallel", "parallel"),
            vmem_limit_bytes=vmem_limit_bytes),
        input_output_aliases=({1: 0} if donate_x else {}),
    )(w, x2, pmax)
    return out2.reshape(B, C, H, W)


# ------------------------------- pure-JAX ref ---------------------------------
def eca_reference(x, conv_weight):
    """Pure-JAX reference mirroring the PyTorch module."""
    pooled = jnp.max(x, axis=(2, 3))                                  # (B, C)
    p = jnp.pad(pooled, ((0, 0), (1, 1)))                             # zero pad
    y = (conv_weight[0] * p[:, :-2]
         + conv_weight[1] * p[:, 1:-1]
         + conv_weight[2] * p[:, 2:])                                 # (B, C)
    gate = jax.nn.sigmoid(y)
    return x * gate[:, :, None, None]


if __name__ == "__main__":
    key = jax.random.PRNGKey(0)
    kx1, kx2, kx3, kx4, kw = jax.random.split(key, 5)

    k_size = 3
    bound = 1.0 / (k_size ** 0.5)          # PyTorch default Conv1d init range
    conv_weight = jax.random.uniform(kw, (1, 1, k_size), dtype=jnp.float32,
                                     minval=-bound, maxval=bound)
    w_flat = conv_weight.reshape(-1)

    # 1) Fused path, HW a multiple of 128, even B (batch packing + both TCs).
    x1 = jax.random.normal(kx1, (2, 4, 16, 16), dtype=jnp.float32)
    o1 = jax.block_until_ready(eca_layer(x1, conv_weight))
    assert o1.shape == x1.shape
    assert jnp.allclose(o1, eca_reference(x1, w_flat), atol=1e-5, rtol=1e-5)

    # 2) Fused path, HW = 144 (not a multiple of 128), odd B / odd C:
    #    exercises the explicit lane mask and the partial leading batch block.
    x2 = jax.random.normal(kx2, (3, 5, 12, 12), dtype=jnp.float32)
    o2 = jax.block_until_ready(eca_layer(x2, conv_weight))
    assert jnp.allclose(o2, eca_reference(x2, w_flat), atol=1e-5, rtol=1e-5)

    # 3) Fused path with bf16 activations (gate math stays f32 in-kernel).
    x3 = jax.random.normal(kx3, (2, 8, 16, 16), dtype=jnp.bfloat16)
    o3 = jax.block_until_ready(eca_layer(x3, conv_weight))
    ref3 = eca_reference(x3.astype(jnp.float32), w_flat)
    assert jnp.allclose(o3.astype(jnp.float32), ref3, atol=2e-2, rtol=2e-2)

    # 4) Two-pass spatially-tiled path (forced via tiny budgets): multiple lane
    #    tiles, a partial remainder tile, the 2-way spatial core split, and a
    #    clamped fully-out-of-range tile slot (n_t = 3, n_split = 2).
    x4 = jax.random.normal(kx4, (2, 6, 18, 18), dtype=jnp.float32)
    o4 = jax.block_until_ready(
        eca_layer(x4, conv_weight, block_budget_bytes=1024,
                  two_pass_tile_bytes=1024))
    assert o4.shape == x4.shape
    assert jnp.allclose(o4, eca_reference(x4, w_flat), atol=1e-5, rtol=1e-5)

    print("KERNEL_OK")
</pallas_src>

<mosaic_0001>
module attributes {stable_mosaic.version = 11 : i64} {
  func.func @_eca_fused_kernel(%arg0: i32, %arg1: memref<3xf32, #tpu.memory_space<smem>>, %arg2: memref<1x4x256xf32, #tpu.memory_space<vmem>>, %arg3: memref<1x4x256xf32, #tpu.memory_space<vmem>>) attributes {dimension_semantics = [#tpu.dimension_semantics<parallel>], iteration_bounds = array<i64: 2>, scalar_prefetch = 0 : i64, scratch_operands = 0 : i64, tpu.core_type = #tpu.core_type<tc>, window_params = [{transform_indices = @transform_0, window_bounds = array<i64: 3>}, {transform_indices = @transform_1, window_bounds = array<i64: 1, 4, 256>}, {transform_indices = @transform_2, window_bounds = array<i64: 1, 4, 256>}]} {
    %c0 = arith.constant 0 : index
    %c0_0 = arith.constant 0 : index
    %c0_1 = arith.constant 0 : index
    %0 = vector.load %arg2[%c0, %c0_0, %c0_1] : memref<1x4x256xf32, #tpu.memory_space<vmem>>, vector<1x4x256xf32>
    %cst = arith.constant dense<0xFF800000> : vector<1x4xf32>
    %1 = vector.multi_reduction <maximumf>, %0, %cst [2] : vector<1x4x256xf32> to vector<1x4xf32>
    %2 = vector.shape_cast %1 : vector<1x4xf32> to vector<1x4x1xf32>
    %c0_2 = arith.constant 0 : index
    %3 = memref.load %arg1[%c0_2] : memref<3xf32, #tpu.memory_space<smem>>
    %c1 = arith.constant 1 : index
    %4 = memref.load %arg1[%c1] : memref<3xf32, #tpu.memory_space<smem>>
    %c2 = arith.constant 2 : index
    %5 = memref.load %arg1[%c2] : memref<3xf32, #tpu.memory_space<smem>>
    %6 = tpu.iota {dimensions = array<i32: 1>} : vector<1x4x1xi32>
    %c0_i32 = arith.constant 0 : i32
    %7 = vector.broadcast %c0_i32 : i32 to vector<1x4x1xi32>
    %8 = arith.cmpi eq, %6, %7 : vector<1x4x1xi32>
    %c1_i32 = arith.constant 1 : i32
    %9 = tpu.dynamic_rotate %2 by %c1_i32 dim 1 : vector<1x4x1xf32>, i32 -> vector<1x4x1xf32>
    %cst_3 = arith.constant 0.000000e+00 : f32
    %10 = vector.broadcast %cst_3 : f32 to vector<1x4x1xf32>
    %11 = arith.select %8, %10, %9 : vector<1x4x1xi1>, vector<1x4x1xf32>
    %c3_i32 = arith.constant 3 : i32
    %12 = vector.broadcast %c3_i32 : i32 to vector<1x4x1xi32>
    %13 = arith.cmpi eq, %6, %12 : vector<1x4x1xi32>
    %c3_i32_4 = arith.constant 3 : i32
    %14 = tpu.dynamic_rotate %2 by %c3_i32_4 dim 1 : vector<1x4x1xf32>, i32 -> vector<1x4x1xf32>
    %cst_5 = arith.constant 0.000000e+00 : f32
    %15 = vector.broadcast %cst_5 : f32 to vector<1x4x1xf32>
    %16 = arith.select %13, %15, %14 : vector<1x4x1xi1>, vector<1x4x1xf32>
    %17 = vector.broadcast %3 : f32 to vector<1x4x1xf32>
    %18 = arith.mulf %17, %11 : vector<1x4x1xf32>
    %19 = vector.broadcast %4 : f32 to vector<1x4x1xf32>
    %20 = arith.mulf %19, %2 : vector<1x4x1xf32>
    %21 = arith.addf %18, %20 : vector<1x4x1xf32>
    %22 = vector.broadcast %5 : f32 to vector<1x4x1xf32>
    %23 = arith.mulf %22, %16 : vector<1x4x1xf32>
    %24 = arith.addf %21, %23 : vector<1x4x1xf32>
    %25 = arith.negf %24 : vector<1x4x1xf32>
    %26 = math.exp %25 : vector<1x4x1xf32>
    %cst_6 = arith.constant 1.000000e+00 : f32
    %27 = vector.broadcast %cst_6 : f32 to vector<1x4x1xf32>
    %28 = arith.addf %27, %26 : vector<1x4x1xf32>
    %29 = arith.divf %27, %28 : vector<1x4x1xf32>
    %30 = vector.broadcast %29 : vector<1x4x1xf32> to vector<1x4x256xf32>
    %31 = arith.mulf %0, %30 : vector<1x4x256xf32>
    %c0_7 = arith.constant 0 : index
    %c0_8 = arith.constant 0 : index
    %c0_9 = arith.constant 0 : index
    %32 = vector.load %arg3[%c0_7, %c0_8, %c0_9] : memref<1x4x256xf32, #tpu.memory_space<vmem>>, vector<1x4x256xf32>
    tpu.vector_store %arg3[%c0_7, %c0_8, %c0_9], %31 {strides = array<i32>} : memref<1x4x256xf32, #tpu.memory_space<vmem>>, vector<1x4x256xf32>,
    return
  }
  func.func @transform_0(%arg0: i32) -> i32 {
    %c0_i32 = arith.constant 0 : i32
    %c0_i32_0 = arith.constant 0 : i32
    return %c0_i32 : i32
  }
  func.func @transform_1(%arg0: i32) -> (i32, i32, i32) {
    %c0_i32 = arith.constant 0 : i32
    %c0_i32_0 = arith.constant 0 : i32
    %c0_i32_1 = arith.constant 0 : i32
    return %arg0, %c0_i32, %c0_i32_0 : i32, i32, i32
  }
  func.func @transform_2(%arg0: i32) -> (i32, i32, i32) {
    %c0_i32 = arith.constant 0 : i32
    %c0_i32_0 = arith.constant 0 : i32
    %c0_i32_1 = arith.constant 0 : i32
    return %arg0, %c0_i32, %c0_i32_0 : i32, i32, i32
  }
}

</mosaic_0001>

<llo_original>
// kernel: tpu_custom_call.1
$region0: #{tpu_custom_call.1}
  #allocation0 [shape = 'u32[]', space=smem, size = 0x4, offset = 0x4, fixed_abs, tag = 'smem constant byte address 0x4 - core index']
  #allocation1 [shape = 'u32[144,128]{1,0:T(1,128)}', space=vmem, size = 0x12000, scoped, tag = 'internal scratch']
  %s0 = inlined_call_operand.hbm [shape: f32[3], index: 0, kind: input, shape index: {}]
  %s1 = inlined_call_operand.hbm [shape: f32[2,4,256], index: 1, kind: input, shape index: {}]
  %s2 = inlined_call_operand.hbm [shape: f32[2,4,256], index: 2, kind: output, shape index: {}]
  %s3 = sld [smem:[#allocation0]]
  $region49: #{tpu_custom_call.1} parent=0
    _
  %s5 = ssub.s32 1, %s3
  %s6 = scalar_select 0, %s5, %s3
  $region1: #{tpu_custom_call.1} parent=0
    #allocation2 [shape = 'u8[512]{0}', space=smem, size = 0x200, scoped, tag = 'input window, operand 0, single buffered']
    #allocation3 [shape = 's32[2]{0}', space=sflag, size = 0x8, scoped, tag = 'scoped memory for tpu_custom_call.1']
    #allocation4 [shape = 's32[2]{0}', space=sflag, size = 0x8, scoped, tag = 'scoped memory for tpu_custom_call.1']
    #allocation5 [shape = 's32[2]{0}', space=sflag, size = 0x8, scoped, tag = 'scoped memory for tpu_custom_call.1']
    #allocation6 [shape = 'u8[8192]{0}', space=vmem, size = 0x2000, scoped, tag = 'input window, operand 1']
    #allocation7 [shape = 'u8[8192]{0}', space=vmem, size = 0x2000, scoped, tag = 'output window, operand 0']
    %7 = vsyncpa [#allocation5], 0
    %8 = vsyncpa [#allocation3], 0
    %s9 = scalar_lea.sflag [#allocation3], 1
    %10 = vsyncpa %s9, 0
    %11 = vsyncpa [#allocation4], 0
    %s12 = scalar_lea.sflag [#allocation4], 1
    %13 = vsyncpa %s12, 0
    loop: start=0, step=1, limit=4
    $region2: #{tpu_custom_call.1} parent=1 // loop_pre_header
      _
    $region3: #{tpu_custom_call.1} parent=1 // loop_header
      %s15 = sphi 0, %s19
      %p16 = scmp.ge.s32.totalorder %s15, 4
      %s23 = sphi 0, %s23
      %s25 = sphi 0, %s23
      %s26 = sphi 0, %s25
      %s40 = sphi 0, %s26
      %s46 = sphi 0, %s48
      %s49 = sphi 0, %s46
      %s50 = sphi 0, %s49
      %s66 = sphi 0, %s50
      %s72 = sphi 0, %s74
      %s75 = sphi 0, %s72
      %s76 = sphi 0, %s75
      %s92 = sphi 0, %s76
    $region4: #{tpu_custom_call.1} parent=1 // loop_header_branch
      %18 = sbr.rel (%p16) target = $region8
    $region5: #{tpu_custom_call.1} parent=1 // loop_body
      %s20 = ssub.s32 %s15, 1
      %s21 = ssub.s32 %s15, 2
      %s22 = sadd.s32 %s15, 1
      %s24 = sadd.s32 %s23, 1
      %p27 = scmp.eq.s32.totalorder %s15, 1
      %p28 = scmp.ne.s32.totalorder %s23, %s25
      %p29 = scmp.eq.s32.totalorder %s15, 0
      %p30 = por %p28, %p29
      %p31 = scmp.ne.s32.totalorder %s23, %s25
      %p32 = scmp.eq.s32.totalorder %s20, 1
      %p33 = por %p31, %p32
      %p34 = scmp.ne.s32.totalorder %s25, %s26
      %p35 = scmp.eq.s32.totalorder %s20, 0
      %p36 = por %p34, %p35
      %p37 = scmp.ne.s32.totalorder %s25, %s26
      %p38 = scmp.eq.s32.totalorder %s21, 1
      %p39 = por %p37, %p38
      %p41 = scmp.ne.s32.totalorder %s26, %s40
      %p42 = scmp.eq.s32.totalorder %s21, 0
      %p43 = por %p41, %p42
      %s44 = ssub.s32 %s15, %s22
      %p45 = scmp.eq.s32.totalorder %s44, 0
      %s47 = sadd.s32 %s46, 1
      %s48 = scalar_select %p45, %s46, %s47
      %p51 = pneg %p45
      %p52 = scmp.eq.s32.totalorder %s15, 1
      %p53 = por %p51, %p52
      %p54 = scmp.ne.s32.totalorder %s46, %s49
      %p55 = scmp.eq.s32.totalorder %s15, 0
      %p56 = por %p54, %p55
      %p57 = scmp.ne.s32.totalorder %s46, %s49
      %p58 = scmp.eq.s32.totalorder %s20, 1
      %p59 = por %p57, %p58
      %p60 = scmp.ne.s32.totalorder %s49, %s50
      %p61 = scmp.eq.s32.totalorder %s20, 0
      %p62 = por %p60, %p61
      %p63 = scmp.ne.s32.totalorder %s49, %s50
      %p64 = scmp.eq.s32.totalorder %s21, 1
      %p65 = por %p63, %p64
      %p67 = scmp.ne.s32.totalorder %s50, %s66
      %p68 = scmp.eq.s32.totalorder %s21, 0
      %p69 = por %p67, %p68
      %s70 = ssub.s32 %s15, %s22
      %p71 = scmp.eq.s32.totalorder %s70, 0
      %s73 = sadd.s32 %s72, 1
      %s74 = scalar_select %p71, %s72, %s73
      %p77 = pneg %p71
      %p78 = scmp.eq.s32.totalorder %s15, 1
      %p79 = por %p77, %p78
      %p80 = scmp.ne.s32.totalorder %s72, %s75
      %p81 = scmp.eq.s32.totalorder %s15, 0
      %p82 = por %p80, %p81
      %p83 = scmp.ne.s32.totalorder %s72, %s75
      %p84 = scmp.eq.s32.totalorder %s20, 1
      %p85 = por %p83, %p84
      %p86 = scmp.ne.s32.totalorder %s75, %s76
      %p87 = scmp.eq.s32.totalorder %s20, 0
      %p88 = por %p86, %p87
      %p89 = scmp.ne.s32.totalorder %s75, %s76
      %p90 = scmp.eq.s32.totalorder %s21, 1
      %p91 = por %p89, %p90
      %p93 = scmp.ne.s32.totalorder %s76, %s92
      %p94 = scmp.eq.s32.totalorder %s21, 0
      %p95 = por %p93, %p94
      %p96 = scmp.le.s32.totalorder 1, %s15
      %p97 = scmp.lt.s32.totalorder %s15, 3
      %p98 = pnand %p96, %p97
      %p99 = pneg %p98
      // Predicated region
      $region9: #{tpu_custom_call.1} parent=5 // pred_check
        _
      $region10: #{tpu_custom_call.1} parent=5 // pred_check_branch
        %101 = sbr.rel (%p98) target = $region12
      $region11: #{tpu_custom_call.1} parent=5 // pred_region
        %s102 = ssub.s32 %s15, 1
        // Predicated region
        $region13: #{tpu_custom_call.1} parent=11 // pred_check
          %p103 = pneg %p36
        $region14: #{tpu_custom_call.1} parent=11 // pred_check_branch
          %105 = sbr.rel (%p103) target = $region16
        $region15: #{tpu_custom_call.1} parent=11 // pred_region
          %s107 = ssub.s32 16, 16
          %108 = vsyncadd [#allocation5], %s107
          %111 = dma.hbm_to_smem %s0, 16, [#allocation2], [#allocation5]
        $region16: #{tpu_custom_call.1} parent=11 // pred_fallthru
          _
      $region12: #{tpu_custom_call.1} parent=5 // pred_fallthru
        _
      %p112 = scmp.lt.s32.totalorder %s15, 2
      // Predicated region
      $region17: #{tpu_custom_call.1} parent=5 // pred_check
        %p113 = pneg %p112
      $region18: #{tpu_custom_call.1} parent=5 // pred_check_branch
        %115 = sbr.rel (%p113) target = $region20
      $region19: #{tpu_custom_call.1} parent=5 // pred_region
        // Predicated region
        $region21: #{tpu_custom_call.1} parent=19 // pred_check
          %p116 = pneg %p56
        $region22: #{tpu_custom_call.1} parent=19 // pred_check_branch
          %118 = sbr.rel (%p116) target = $region24
        $region23: #{tpu_custom_call.1} parent=19 // pred_region
          %s119 = sand.u32 %s46, 1
          %s120 = scalar_lea.sflag [#allocation3], %s119
          %s121 = sand.u32 %s46, 1
          %s122 = smul.addr %s121, 8
          %s123 = scalar_lea.vmem [#allocation6], %s122
          %s125 = ssub.s32 128, 128
          %126 = vsyncadd %s120, %s125
          %s127 = smul.addr %s15, 2
          %s128 = smul.addr %s127, 64
          %s129 = scalar_lea.hbm %s1, %s128
          %s131 = sshll.u32 %s123, 4
          %s132 = int_to_ptr.vmem [resolvable:$true] %s131
          %134 = dma.hbm_to_vmem [thread:$0]  %s129, 128, %s132, %s120
        $region24: #{tpu_custom_call.1} parent=19 // pred_fallthru
          _
      $region20: #{tpu_custom_call.1} parent=5 // pred_fallthru
        _
      %p135 = scmp.le.s32.totalorder 1, %s15
      %p136 = scmp.lt.s32.totalorder %s15, 3
      %p137 = pnand %p135, %p136
      %p138 = pneg %p137
      // Predicated region
      $region25: #{tpu_custom_call.1} parent=5 // pred_check
        _
      $region26: #{tpu_custom_call.1} parent=5 // pred_check_branch
        %140 = sbr.rel (%p137) target = $region28
      $region27: #{tpu_custom_call.1} parent=5 // pred_region
        %s141 = ssub.s32 %s15, 1
        // Predicated region
        $region29: #{tpu_custom_call.1} parent=27 // pred_check
          %p142 = pneg %p36
        $region30: #{tpu_custom_call.1} parent=27 // pred_check_branch
          %144 = sbr.rel (%p142) target = $region32
        $region31: #{tpu_custom_call.1} parent=27 // pred_region
          %145 = dma.done [#allocation5], 16
        $region32: #{tpu_custom_call.1} parent=27 // pred_fallthru
          _
        %s146 = sand.u32 %s49, 1
        %s147 = scalar_lea.sflag [#allocation3], %s146
        %s148 = sand.u32 %s49, 1
        %s149 = smul.addr %s148, 8
        %s150 = scalar_lea.vmem [#allocation6], %s149
        // Predicated region
        $region33: #{tpu_custom_call.1} parent=27 // pred_check
          %p151 = pneg %p62
        $region34: #{tpu_custom_call.1} parent=27 // pred_check_branch
          %153 = sbr.rel (%p151) target = $region36
        $region35: #{tpu_custom_call.1} parent=27 // pred_region
          %154 = dma.done %s147, 128
        $region36: #{tpu_custom_call.1} parent=27 // pred_fallthru
          _
        %155 = sfence
        %p156 = pneg %p36
        %p157 = pneg %p33
        %s158 = sand.u32 %s49, 1
        %s159 = scalar_lea.sflag [#allocation3], %s158
        %s160 = sand.u32 %s49, 1
        %s161 = smul.addr %s160, 8
        %s162 = scalar_lea.vmem [#allocation6], %s161
        %p163 = pneg %p62
        %p164 = pneg %p59
        %p165 = pneg %p88
        %p166 = pneg %p85
        %s167 = sand.u32 %s75, 1
        %s168 = scalar_lea.sflag [#allocation4], %s167
        %s169 = sand.u32 %s75, 1
        %s170 = smul.addr %s169, 8
        %s171 = scalar_lea.vmem [#allocation7], %s170
        %v172 = vld [vmem:[%s150] sm:$0xff]
        %v174 = vcombine.high %v172, %v172
        %vm176 = vcmask 1043456
        %v177 = vsel %vm176, %v172, -inf
        %v178 = vsel %vm176, %v174, -inf
        %v179 = vmax.f32 %v177, %v178
        %180 = vmax.xlane.f32.xlu0 %v179
        %v181 = vpop.xlane.xlu0 %180
        %s182 = sld [smem:[#allocation2]]
        %s183 = sld [smem:[#allocation2 + $0x1]]
        %s184 = sld [smem:[#allocation2 + $0x2]]
        %v185 = vlaneseq
        %v186 = vshrl.u32 %v185, 7
        %vm187 = vcmp.eq.s32.totalorder %v186, 0
        %vm188 = vcmask 1047556
        %v189 = vrot.slane %v181, 4
        %v190 = vsel %vm188, %v189, %v181
        %v191 = vrot.slane %v190, 4
        %v192 = vsel %vm188, %v191, %v181
        %v194 = vrot.slane %v192, 3
        %v196 = vsel %vm187, 0.0, %v194
        %vm197 = vcmp.eq.s32.totalorder %v186, 3
        %v198 = vrot.slane %v192, 1
        %v200 = vsel %vm197, 0.0, %v198
        %v201 = vstv %s182
        %v202 = vmul.f32 %v201, %v196
        %v203 = vstv %s183
        %v204 = vmul.f32 %v203, %v181
        %v205 = vadd.f32 %v202, %v204
        %v206 = vstv %s184
        %v207 = vmul.f32 %v206, %v200
        %v208 = vadd.f32 %v205, %v207
        %v209 = vxor.u32 %v208, 2147483648
        %v210 = vmul.f32 %v209, 1.442695
        %v211 = vpow.pop %v210
        %v212 = vadd.f32 %v211, 1.0
        %v213 = vrcp.pop %v212
        %v214 = vmul.f32 1.0, %v213
        %216 = vset.pattern.permute.xlu0 0
        %217 = vperm.xlu0 %216, %v214
        %v218 = vpop.permute.xlu0 %217
        %v220 = vunpack.c.l.s4 839922192
        %v221 = vunpack.c.0.s8 %v220
        %v222 = vlaneseq
        %v223 = vshrl.u32 %v222, 7
        %v224 = vsub.s32 %v221, %v223
        %v225 = vrot.slane %v218, %v224
        %v227 = vmul.f32 %v172, %v225
        %228 = vst [vmem:[%s171] sm:$0xff] %v227
        %s229 = sand.u32 %s75, 1
        %s230 = scalar_lea.sflag [#allocation4], %s229
        %s231 = sand.u32 %s75, 1
        %s232 = smul.addr %s231, 8
        %s233 = scalar_lea.vmem [#allocation7], %s232
        // Predicated region
        $region37: #{tpu_custom_call.1} parent=27 // pred_check
          %p234 = pneg %p85
        $region38: #{tpu_custom_call.1} parent=27 // pred_check_branch
          %236 = sbr.rel (%p234) target = $region40
        $region39: #{tpu_custom_call.1} parent=27 // pred_region
          %s238 = ssub.s32 128, 128
          %239 = vsyncadd %s230, %s238
          %s240 = smul.addr %s20, 2
          %s241 = smul.addr %s240, 64
          %s242 = scalar_lea.hbm %s2, %s241
          %s244 = sshll.u32 %s233, 4
          %s245 = int_to_ptr.vmem [resolvable:$true] %s244
          %247 = dma.vmem_to_hbm [thread:$0]  %s245, 128, %s242, %s230
        $region40: #{tpu_custom_call.1} parent=27 // pred_fallthru
          _
      $region28: #{tpu_custom_call.1} parent=5 // pred_fallthru
        _
      %p248 = scmp.le.s32.totalorder 2, %s15
      // Predicated region
      $region41: #{tpu_custom_call.1} parent=5 // pred_check
        %p249 = pneg %p248
      $region42: #{tpu_custom_call.1} parent=5 // pred_check_branch
        %251 = sbr.rel (%p249) target = $region44
      $region43: #{tpu_custom_call.1} parent=5 // pred_region
        %s252 = ssub.s32 %s15, 2
        // Predicated region
        $region45: #{tpu_custom_call.1} parent=43 // pred_check
          %p253 = pneg %p91
        $region46: #{tpu_custom_call.1} parent=43 // pred_check_branch
          %255 = sbr.rel (%p253) target = $region48
        $region47: #{tpu_custom_call.1} parent=43 // pred_region
          %s256 = sand.u32 %s76, 1
          %s257 = scalar_lea.sflag [#allocation4], %s256
          %s258 = sand.u32 %s76, 1
          %s259 = smul.addr %s258, 8
          %s260 = scalar_lea.vmem [#allocation7], %s259
          %261 = dma.done %s257, 128
        $region48: #{tpu_custom_call.1} parent=43 // pred_fallthru
          _
      $region44: #{tpu_custom_call.1} parent=5 // pred_fallthru
        _
    $region6: #{tpu_custom_call.1} parent=1 // loop_footer
      %s19 = sadd.s32 1, %s15
    $region7: #{tpu_custom_call.1} parent=1 // loop_footer_branch
      %14 = sbr.rel target = $region3
    $region8: #{tpu_custom_call.1} parent=1 // loop_exit
      _
    %262 = vsyncpa [#allocation3], 1
    %s263 = scalar_lea.sflag [#allocation3], 1
    %264 = vsyncpa %s263, 1
    %265 = vsyncpa [#allocation4], 1
    %s266 = scalar_lea.sflag [#allocation4], 1
    %267 = vsyncpa %s266, 1
    %268 = vsyncpa [#allocation5], 1
    %s269 = scalar_lea.sflag [#allocation5], 1
    %270 = vsyncpa %s269, 1

</llo_original>
